<compile_context>
chip_gen: v7x
topology: tpu7x:2x2x1
jax: 0.10.0
libtpu: 0.0.40
codegen_flags: <defaults>
</compile_context>

<pallas_src>
import functools
import math

import numpy as np
import jax
import jax.numpy as jnp
from jax.experimental import pallas as pl
from jax.experimental.pallas import tpu as pltpu

PAD = 0  # const.PAD

COMPUTE_DTYPE = jnp.bfloat16   # MXU inputs / HBM activations & weights
MASK_DTYPE = jnp.bfloat16      # additive attention bias
_VMEM_LIMIT = 48 * 1024 * 1024  # explicit scoped-VMEM budget (headroom under v7x 64 MiB)


# ----------------------------------------------------------------------------- tiling helpers

def _round_up(x, m):
    return ((x + m - 1) // m) * m


def _tile(dim, cap, align):
    """Return (tile, padded_dim).  If dim <= cap use the full dim (always legal).
    Otherwise pick an aligned tile close to dim/ceil(dim/cap) and pad dim up to a
    multiple of it -- avoids degenerate tiny tiles for awkward sizes."""
    if dim <= cap:
        return dim, dim
    n = -(-dim // cap)                      # number of tiles
    t = _round_up(-(-dim // n), align)      # ceil(dim/n) rounded up to alignment
    return t, t * n


def _pad_axis(x, axis, new_size):
    pad = new_size - x.shape[axis]
    if pad == 0:
        return x
    widths = [(0, 0)] * x.ndim
    widths[axis] = (0, pad)
    return jnp.pad(x, widths)


# ----------------------------------------------------------------------------- tiled linear (bf16 in, f32 acc)

def _linear_kernel(x_ref, w_ref, b_ref, o_ref, acc_ref):
    @pl.when(pl.program_id(2) == 0)
    def _():
        acc_ref[...] = jnp.zeros_like(acc_ref)

    acc_ref[...] += jnp.dot(x_ref[...], w_ref[...],
                            preferred_element_type=jnp.float32)

    @pl.when(pl.program_id(2) == pl.num_programs(2) - 1)
    def _():
        o_ref[...] = (acc_ref[...] + b_ref[...]).astype(o_ref.dtype)


def linear(x, w, b=None):
    """x: (M, K) bf16, w: (K, N) bf16, b: (N,) f32 or None -> (M, N) bf16."""
    M, K = x.shape
    N = w.shape[1]
    tm, Mp = _tile(M, 512, 8)
    tn, Np = _tile(N, 512, 128)
    tk, Kp = _tile(K, 1024, 128)

    xp = _pad_axis(_pad_axis(x.astype(COMPUTE_DTYPE), 0, Mp), 1, Kp)
    wp = _pad_axis(_pad_axis(w.astype(COMPUTE_DTYPE), 0, Kp), 1, Np)
    if b is None:
        bp = jnp.zeros((1, Np), jnp.float32)
    else:
        bp = _pad_axis(b.reshape(1, N).astype(jnp.float32), 1, Np)

    grid = (Mp // tm, Np // tn, Kp // tk)
    out = pl.pallas_call(
        _linear_kernel,
        out_shape=jax.ShapeDtypeStruct((Mp, Np), COMPUTE_DTYPE),
        grid_spec=pltpu.PrefetchScalarGridSpec(
            num_scalar_prefetch=0,
            grid=grid,
            in_specs=[pl.BlockSpec((tm, tk), lambda i, j, k: (i, k)),
                      pl.BlockSpec((tk, tn), lambda i, j, k: (k, j)),
                      pl.BlockSpec((1, tn), lambda i, j, k: (0, j))],
            out_specs=pl.BlockSpec((tm, tn), lambda i, j, k: (i, j)),
            scratch_shapes=[pltpu.VMEM((tm, tn), jnp.float32)],
        ),
        compiler_params=pltpu.CompilerParams(
            dimension_semantics=("parallel", "parallel", "arbitrary"),
            vmem_limit_bytes=_VMEM_LIMIT),
    )(xp, wp, bp)
    if (Mp, Np) != (M, N):
        out = out[:M, :N]
    return out


# ----------------------------------------------------------------------------- fused proj + residual + LayerNorm

def _proj_res_ln_kernel(x_ref, w_ref, b_ref, r_ref, g_ref, bb_ref, o_ref, *, eps):
    y = jnp.dot(x_ref[...], w_ref[...], preferred_element_type=jnp.float32)
    y = y + b_ref[...] + r_ref[...].astype(jnp.float32)
    mu = jnp.mean(y, axis=-1, keepdims=True)
    var = jnp.mean(jnp.square(y - mu), axis=-1, keepdims=True)
    o_ref[...] = ((y - mu) * jax.lax.rsqrt(var + eps) * g_ref[...]
                  + bb_ref[...]).astype(o_ref.dtype)


def proj_residual_layer_norm(x, w, b, r, g, bb, eps=1e-6):
    """LayerNorm(x @ w + b + r).  x: (M, K) bf16, w: (K, N) bf16, r: (M, N) bf16."""
    M, K = x.shape
    N = w.shape[1]
    tm, Mp = _tile(M, 256, 8)
    xp = _pad_axis(x.astype(COMPUTE_DTYPE), 0, Mp)
    rp = _pad_axis(r.astype(COMPUTE_DTYPE), 0, Mp)
    grid = (Mp // tm,)
    out = pl.pallas_call(
        functools.partial(_proj_res_ln_kernel, eps=eps),
        out_shape=jax.ShapeDtypeStruct((Mp, N), COMPUTE_DTYPE),
        grid_spec=pltpu.PrefetchScalarGridSpec(
            num_scalar_prefetch=0,
            grid=grid,
            in_specs=[pl.BlockSpec((tm, K), lambda i: (i, 0)),
                      pl.BlockSpec((K, N), lambda i: (0, 0)),
                      pl.BlockSpec((1, N), lambda i: (0, 0)),
                      pl.BlockSpec((tm, N), lambda i: (i, 0)),
                      pl.BlockSpec((1, N), lambda i: (0, 0)),
                      pl.BlockSpec((1, N), lambda i: (0, 0))],
            out_specs=pl.BlockSpec((tm, N), lambda i: (i, 0)),
        ),
        compiler_params=pltpu.CompilerParams(
            dimension_semantics=("parallel",),
            vmem_limit_bytes=_VMEM_LIMIT),
    )(xp, w.astype(COMPUTE_DTYPE), b.reshape(1, N).astype(jnp.float32), rp,
      g.reshape(1, N).astype(jnp.float32), bb.reshape(1, N).astype(jnp.float32))
    return out[:M] if Mp != M else out


# ----------------------------------------------------------------------------- fused position-wise FFN (Dh-tiled)

def _ffn_kernel(x_ref, w1_ref, b1_ref, w2_ref, b2_ref, g_ref, bb_ref, o_ref, acc_ref,
                *, eps):
    @pl.when(pl.program_id(1) == 0)
    def _():
        acc_ref[...] = jnp.zeros_like(acc_ref)

    x = x_ref[...]                                              # (tm, D) bf16
    h = jnp.dot(x, w1_ref[...], preferred_element_type=jnp.float32) + b1_ref[...]
    h = jnp.maximum(h, 0.0)
    acc_ref[...] += jnp.dot(h.astype(x.dtype), w2_ref[...],
                            preferred_element_type=jnp.float32)

    @pl.when(pl.program_id(1) == pl.num_programs(1) - 1)
    def _():
        y = acc_ref[...] + b2_ref[...] + x.astype(jnp.float32)  # residual
        mu = jnp.mean(y, axis=-1, keepdims=True)
        var = jnp.mean(jnp.square(y - mu), axis=-1, keepdims=True)
        o_ref[...] = ((y - mu) * jax.lax.rsqrt(var + eps) * g_ref[...]
                      + bb_ref[...]).astype(o_ref.dtype)


def pos_ffn(p, x, eps=1e-6):
    """Fused FFN: LayerNorm(relu(x@w1+b1)@w2+b2 + x), tiled over rows and over Dh."""
    B, L, D = x.shape
    Dh = p["w1"].shape[1]
    M = B * L
    x2 = x.reshape(M, D)
    tm, Mp = _tile(M, 256, 8)
    tdh, Dhp = _tile(Dh, 512, 128)

    x2 = _pad_axis(x2.astype(COMPUTE_DTYPE), 0, Mp)
    w1 = _pad_axis(p["w1"].astype(COMPUTE_DTYPE), 1, Dhp)
    b1 = _pad_axis(p["b1"].reshape(1, Dh).astype(jnp.float32), 1, Dhp)
    w2 = _pad_axis(p["w2"].astype(COMPUTE_DTYPE), 0, Dhp)

    grid = (Mp // tm, Dhp // tdh)
    y = pl.pallas_call(
        functools.partial(_ffn_kernel, eps=eps),
        out_shape=jax.ShapeDtypeStruct((Mp, D), COMPUTE_DTYPE),
        grid_spec=pltpu.PrefetchScalarGridSpec(
            num_scalar_prefetch=0,
            grid=grid,
            in_specs=[pl.BlockSpec((tm, D), lambda i, j: (i, 0)),
                      pl.BlockSpec((D, tdh), lambda i, j: (0, j)),
                      pl.BlockSpec((1, tdh), lambda i, j: (0, j)),
                      pl.BlockSpec((tdh, D), lambda i, j: (j, 0)),
                      pl.BlockSpec((1, D), lambda i, j: (0, 0)),
                      pl.BlockSpec((1, D), lambda i, j: (0, 0)),
                      pl.BlockSpec((1, D), lambda i, j: (0, 0))],
            out_specs=pl.BlockSpec((tm, D), lambda i, j: (i, 0)),
            scratch_shapes=[pltpu.VMEM((tm, D), jnp.float32)],
        ),
        compiler_params=pltpu.CompilerParams(
            dimension_semantics=("parallel", "arbitrary"),
            vmem_limit_bytes=_VMEM_LIMIT),
    )(x2, w1, b1, w2, p["b2"].reshape(1, D).astype(jnp.float32),
      p["ln_g"].reshape(1, D).astype(jnp.float32),
      p["ln_b"].reshape(1, D).astype(jnp.float32))
    if Mp != M:
        y = y[:M]
    return y.reshape(B, L, D)


# ----------------------------------------------------------------------------- attention, grid over (B, H)

def _attention_kernel(q_ref, k_ref, v_ref, b_ref, ctx_ref, attn_ref=None, *, scale):
    q = q_ref[0, 0]        # (Lq, d_k) bf16
    k = k_ref[0, 0]        # (Lk, d_k) bf16
    v = v_ref[0, 0]        # (Lk, d_v) bf16
    bias = b_ref[0]        # (Lq, Lk) bf16 additive bias (0 or -1e30)

    s = jax.lax.dot_general(q, k, (((1,), (1,)), ((), ())),
                            preferred_element_type=jnp.float32)
    s = s * scale + bias.astype(jnp.float32)
    s = s - jnp.max(s, axis=-1, keepdims=True)
    e = jnp.exp(s)
    denom = jnp.sum(e, axis=-1, keepdims=True)
    p = e * pl.reciprocal(denom, approx=True)

    if attn_ref is not None:
        attn_ref[0, 0] = p
    ctx_ref[0, 0] = jnp.dot(p.astype(v.dtype), v,
                            preferred_element_type=jnp.float32).astype(ctx_ref.dtype)


def scaled_dot_attention(q, k, v, bias, scale, return_attn=True):
    """q: (B, H, Lq, d_k) bf16, k/v: (B, H, Lk, d) bf16, bias: (B, Lq, Lk) bf16 additive."""
    B, H, Lq, d_k = q.shape
    Lk = k.shape[2]
    d_v = v.shape[3]

    ctx_shape = jax.ShapeDtypeStruct((B, H, Lq, d_v), COMPUTE_DTYPE)
    ctx_spec = pl.BlockSpec((1, 1, Lq, d_v), lambda b, h: (b, h, 0, 0))
    if return_attn:
        out_shape = (ctx_shape, jax.ShapeDtypeStruct((B, H, Lq, Lk), jnp.float32))
        out_specs = (ctx_spec, pl.BlockSpec((1, 1, Lq, Lk), lambda b, h: (b, h, 0, 0)))
    else:
        out_shape = ctx_shape
        out_specs = ctx_spec

    res = pl.pallas_call(
        functools.partial(_attention_kernel, scale=scale),
        out_shape=out_shape,
        grid=(B, H),
        in_specs=[pl.BlockSpec((1, 1, Lq, d_k), lambda b, h: (b, h, 0, 0)),
                  pl.BlockSpec((1, 1, Lk, d_k), lambda b, h: (b, h, 0, 0)),
                  pl.BlockSpec((1, 1, Lk, d_v), lambda b, h: (b, h, 0, 0)),
                  pl.BlockSpec((1, Lq, Lk), lambda b, h: (b, 0, 0))],  # fetched once per b
        out_specs=out_specs,
        compiler_params=pltpu.CompilerParams(
            dimension_semantics=("parallel", "parallel"),
            vmem_limit_bytes=_VMEM_LIMIT),
    )(q, k, v, bias)
    # TODO(synk): for long L, tile over Lk with online softmax (flash-style) to cap VMEM.
    if return_attn:
        ctx, attn = res
        return ctx, attn
    return res, None


# ----------------------------------------------------------------------------- model glue

def position_encoding_init(n_position, d_pos_vec):
    pos = np.arange(n_position)[:, None].astype(np.float64)
    j = np.arange(d_pos_vec)[None, :]
    angle = pos / np.power(10000.0, 2.0 * (j // 2) / d_pos_vec)
    pe = angle.copy()
    pe[1:, 0::2] = np.sin(angle[1:, 0::2])
    pe[1:, 1::2] = np.cos(angle[1:, 1::2])
    pe[0, :] = 0.0  # padding_idx row
    return jnp.asarray(pe, dtype=jnp.float32)


def get_attn_padding_mask(seq_q, seq_k):
    B, Lq = seq_q.shape
    Lk = seq_k.shape[1]
    pad = (seq_k == PAD)[:, None, :]
    return jnp.broadcast_to(pad, (B, Lq, Lk))


def get_attn_subsequent_mask(seq):
    B, L = seq.shape
    sub = jnp.triu(jnp.ones((L, L), dtype=jnp.int32), k=1)
    return jnp.broadcast_to(sub[None], (B, L, L))


def multi_head_attention(p, q_in, kv_in, bias, n_head, self_attn, return_attn=True):
    B, Lq, d_model = q_in.shape
    Lk = kv_in.shape[1]
    d_k = d_model // n_head
    d_v = d_k
    residual = q_in

    if self_attn:
        # fused Q|K|V projection (weights pre-concatenated at init)
        qkv = linear(q_in.reshape(B * Lq, d_model), p["w_qkv"])
        q = qkv[:, :d_model]
        k = qkv[:, d_model:2 * d_model]
        v = qkv[:, 2 * d_model:]
    else:
        q = linear(q_in.reshape(B * Lq, d_model), p["w_q"])
        kv = linear(kv_in.reshape(B * Lk, d_model), p["w_kv"])  # fused K|V
        k = kv[:, :d_model]
        v = kv[:, d_model:]

    # Head split kept in XLA glue: a per-head BlockSpec lane slice (block last dim
    # d_k < 128) would violate the Mosaic (8,128) block constraint.
    # TODO(synk): when d_k >= 128, slice heads via index_map and drop these transposes.
    def split_heads(x, L):
        return x.reshape(B, L, n_head, d_k).transpose(0, 2, 1, 3)  # (B, H, L, d)

    qh, kh, vh = split_heads(q, Lq), split_heads(k, Lk), split_heads(v, Lk)

    scale = 1.0 / math.sqrt(d_k)
    ctx, attn = scaled_dot_attention(qh, kh, vh, bias, scale, return_attn=return_attn)

    # merge heads -> (B*Lq, H*d_v); output proj + residual + LayerNorm fused in one kernel
    ctx2d = ctx.transpose(0, 2, 1, 3).reshape(B * Lq, n_head * d_v)
    out = proj_residual_layer_norm(
        ctx2d, p["proj_w"], p["proj_b"],
        residual.reshape(B * Lq, d_model), p["ln_g"], p["ln_b"],
    ).reshape(B, Lq, d_model)
    return out, attn  # attn: (B, H, Lq, Lk) f32 (or None)


def decoder_layer(p, dec_input, enc_output, slf_bias, enc_bias, n_head):
    out, slf_attn = multi_head_attention(p["slf_attn"], dec_input, dec_input,
                                         slf_bias, n_head, self_attn=True)
    out, enc_attn = multi_head_attention(p["enc_attn"], out, enc_output,
                                         enc_bias, n_head, self_attn=False)
    out = pos_ffn(p["ffn"], out)
    return out, slf_attn, enc_attn


def decoder_forward(params, tgt_seq, tgt_pos, src_seq, enc_outputs, n_head):
    # embeddings (gather kept in plain-JAX glue); activations in bf16
    dec_input = (params["tgt_word_emb"][tgt_seq]
                 + params["position_enc"][tgt_pos]).astype(COMPUTE_DTYPE)

    # masks -> additive bf16 bias (0 / -1e30), built once and shared by all layers.
    # Note: a fully-masked query row degrades to the unmasked softmax of that row
    # (PyTorch masked_fill(-inf) would give NaN); such rows never occur in this demo.
    slf_mask = (get_attn_padding_mask(tgt_seq, tgt_seq).astype(jnp.int32)
                + get_attn_subsequent_mask(tgt_seq)) > 0
    slf_bias = jnp.where(slf_mask, -1e30, 0.0).astype(MASK_DTYPE)
    enc_mask = get_attn_padding_mask(tgt_seq, src_seq)
    enc_bias = jnp.where(enc_mask, -1e30, 0.0).astype(MASK_DTYPE)

    dec_outputs, dec_slf_attns, dec_enc_attns = [], [], []
    dec_output = dec_input
    for layer_params, enc_output in zip(params["layers"], enc_outputs):
        dec_output, slf_attn, enc_attn = decoder_layer(
            layer_params, dec_output, enc_output.astype(COMPUTE_DTYPE),
            slf_bias, enc_bias, n_head)
        dec_outputs.append(dec_output)
        dec_slf_attns.append(slf_attn)
        dec_enc_attns.append(enc_attn)
    return dec_outputs, dec_slf_attns, dec_enc_attns


# ----------------------------------------------------------------------------- parameter init

def init_decoder_params(key, n_tgt_vocab, n_max_seq, n_layers, n_head, d_model, d_inner):
    n_position = n_max_seq + 1
    d_k = d_model // n_head

    def dense(k, fan_in, shape):
        return (jax.random.normal(k, shape, jnp.float32)
                / math.sqrt(fan_in)).astype(COMPUTE_DTYPE)

    keys = jax.random.split(key, 1 + n_layers)
    word_emb = 0.1 * jax.random.normal(keys[0], (n_tgt_vocab, d_model), jnp.float32)
    word_emb = word_emb.at[PAD].set(0.0).astype(COMPUTE_DTYPE)  # padding_idx
    pos_enc = position_encoding_init(n_position, d_model).astype(COMPUTE_DTYPE)

    layers = []
    for li in range(n_layers):
        lk = jax.random.split(keys[1 + li], 12)

        def attn_block(k0, k1, k2, k3, fuse_qkv):
            w_q = dense(k0, d_model, (d_model, n_head * d_k))
            w_k = dense(k1, d_model, (d_model, n_head * d_k))
            w_v = dense(k2, d_model, (d_model, n_head * d_k))
            blk = dict(
                proj_w=dense(k3, n_head * d_k, (n_head * d_k, d_model)),
                proj_b=jnp.zeros((d_model,), jnp.float32),
                ln_g=jnp.ones((d_model,), jnp.float32),
                ln_b=jnp.zeros((d_model,), jnp.float32),
            )
            if fuse_qkv:
                blk["w_qkv"] = jnp.concatenate([w_q, w_k, w_v], axis=1)  # fused at init
            else:
                blk["w_q"] = w_q
                blk["w_kv"] = jnp.concatenate([w_k, w_v], axis=1)        # fused at init
            return blk

        layers.append(dict(
            slf_attn=attn_block(lk[0], lk[1], lk[2], lk[3], True),
            enc_attn=attn_block(lk[4], lk[5], lk[6], lk[7], False),
            ffn=dict(
                w1=dense(lk[8], d_model, (d_model, d_inner)),
                b1=jnp.zeros((d_inner,), jnp.float32),
                w2=dense(lk[9], d_inner, (d_inner, d_model)),
                b2=jnp.zeros((d_model,), jnp.float32),
                ln_g=jnp.ones((d_model,), jnp.float32),
                ln_b=jnp.zeros((d_model,), jnp.float32),
            ),
        ))
    return dict(tgt_word_emb=word_emb, position_enc=pos_enc, layers=layers)


# ----------------------------------------------------------------------------- main

if __name__ == "__main__":
    # small shapes
    n_tgt_vocab, n_max_seq = 20, 16
    n_layers, n_head = 2, 4
    d_model, d_inner = 32, 64
    B, Lq, Lk = 2, 8, 8

    key = jax.random.PRNGKey(0)
    k_param, k_tgt, k_enc = jax.random.split(key, 3)

    params = init_decoder_params(k_param, n_tgt_vocab, n_max_seq, n_layers, n_head,
                                 d_model, d_inner)

    # target tokens in [1, vocab) so no PAD query rows; positions start at 1
    tgt_seq = jax.random.randint(k_tgt, (B, Lq), 1, n_tgt_vocab, dtype=jnp.int32)
    tgt_pos = jnp.broadcast_to(jnp.arange(1, Lq + 1, dtype=jnp.int32)[None, :], (B, Lq))
    # source sequence with one PAD token per batch to exercise the padding mask
    src_seq = jax.random.randint(k_enc, (B, Lk), 1, n_tgt_vocab, dtype=jnp.int32)
    src_seq = src_seq.at[:, -1].set(PAD)

    enc_keys = jax.random.split(k_enc, n_layers)
    enc_outputs = [jax.random.normal(ek, (B, Lk, d_model), jnp.float32) for ek in enc_keys]

    dec_outputs, dec_slf_attns, dec_enc_attns = decoder_forward(
        params, tgt_seq, tgt_pos, src_seq, enc_outputs, n_head)

    jax.block_until_ready(dec_outputs[-1])
    jax.block_until_ready(dec_slf_attns[-1])
    jax.block_until_ready(dec_enc_attns[-1])

    assert dec_outputs[-1].shape == (B, Lq, d_model)
    assert dec_slf_attns[-1].shape == (B, n_head, Lq, Lq)
    assert dec_enc_attns[-1].shape == (B, n_head, Lq, Lk)
    assert not bool(jnp.any(jnp.isnan(dec_outputs[-1].astype(jnp.float32))))
    assert not bool(jnp.any(jnp.isnan(dec_slf_attns[-1])))
    print("KERNEL_OK")
</pallas_src>

<mosaic_0001>
module attributes {stable_mosaic.version = 11 : i64} {
  func.func @_linear_kernel(%arg0: i32, %arg1: i32, %arg2: i32, %arg3: memref<16x32xbf16, #tpu.memory_space<vmem>>, %arg4: memref<32x96xbf16, #tpu.memory_space<vmem>>, %arg5: memref<1x96xf32, #tpu.memory_space<vmem>>, %arg6: memref<16x96xbf16, #tpu.memory_space<vmem>>, %arg7: memref<16x96xf32, #tpu.memory_space<vmem>>) attributes {dimension_semantics = [#tpu.dimension_semantics<parallel>, #tpu.dimension_semantics<parallel>, #tpu.dimension_semantics<arbitrary>], iteration_bounds = array<i64: 1, 1, 1>, scalar_prefetch = 0 : i64, scratch_operands = 1 : i64, tpu.core_type = #tpu.core_type<tc>, window_params = [{transform_indices = @transform_0, window_bounds = array<i64: 16, 32>}, {transform_indices = @transform_1, window_bounds = array<i64: 32, 96>}, {transform_indices = @transform_2, window_bounds = array<i64: 1, 96>}, {transform_indices = @transform_3, window_bounds = array<i64: 16, 96>}]} {
    %c0_i32 = arith.constant 0 : i32
    %0 = arith.cmpi eq, %arg2, %c0_i32 : i32
    %1 = arith.extui %0 : i1 to i32
    %c0_i32_0 = arith.constant 0 : i32
    %2 = arith.cmpi ne, %1, %c0_i32_0 : i32
    scf.if %2 {
      %cst_10 = arith.constant 0.000000e+00 : f32
      %12 = vector.broadcast %cst_10 : f32 to vector<16x96xf32>
      %c0_11 = arith.constant 0 : index
      %c0_12 = arith.constant 0 : index
      %13 = vector.load %arg7[%c0_11, %c0_12] : memref<16x96xf32, #tpu.memory_space<vmem>>, vector<16x96xf32>
      tpu.vector_store %arg7[%c0_11, %c0_12], %12 {strides = array<i32>} : memref<16x96xf32, #tpu.memory_space<vmem>>, vector<16x96xf32>,
    } else {
    }
    %c0 = arith.constant 0 : index
    %c0_1 = arith.constant 0 : index
    %3 = vector.load %arg7[%c0, %c0_1] : memref<16x96xf32, #tpu.memory_space<vmem>>, vector<16x96xf32>
    %c0_2 = arith.constant 0 : index
    %c0_3 = arith.constant 0 : index
    %4 = vector.load %arg3[%c0_2, %c0_3] : memref<16x32xbf16, #tpu.memory_space<vmem>>, vector<16x32xbf16>
    %c0_4 = arith.constant 0 : index
    %c0_5 = arith.constant 0 : index
    %5 = vector.load %arg4[%c0_4, %c0_5] : memref<32x96xbf16, #tpu.memory_space<vmem>>, vector<32x96xbf16>
    %cst = arith.constant dense<0.000000e+00> : vector<16x96xf32>
    %6 = tpu.matmul %4, %5, %cst {dimension_numbers = #tpu.dot_dimension_numbers<[1], [0], [0], [1], [0, 0, 1, 1], [], []>} : vector<16x32xbf16>, vector<32x96xbf16>, vector<16x96xf32> -> vector<16x96xf32>
    %7 = arith.addf %3, %6 : vector<16x96xf32>
    %c0_6 = arith.constant 0 : index
    %c0_7 = arith.constant 0 : index
    %8 = vector.load %arg7[%c0_6, %c0_7] : memref<16x96xf32, #tpu.memory_space<vmem>>, vector<16x96xf32>
    tpu.vector_store %arg7[%c0_6, %c0_7], %7 {strides = array<i32>} : memref<16x96xf32, #tpu.memory_space<vmem>>, vector<16x96xf32>,
    %c0_i32_8 = arith.constant 0 : i32
    %9 = arith.cmpi eq, %arg2, %c0_i32_8 : i32
    %10 = arith.extui %9 : i1 to i32
    %c0_i32_9 = arith.constant 0 : i32
    %11 = arith.cmpi ne, %10, %c0_i32_9 : i32
    scf.if %11 {
      %c0_10 = arith.constant 0 : index
      %c0_11 = arith.constant 0 : index
      %12 = vector.load %arg7[%c0_10, %c0_11] : memref<16x96xf32, #tpu.memory_space<vmem>>, vector<16x96xf32>
      %c0_12 = arith.constant 0 : index
      %c0_13 = arith.constant 0 : index
      %13 = vector.load %arg5[%c0_12, %c0_13] : memref<1x96xf32, #tpu.memory_space<vmem>>, vector<1x96xf32>
      %14 = vector.broadcast %13 : vector<1x96xf32> to vector<16x96xf32>
      %15 = arith.addf %12, %14 : vector<16x96xf32>
      %16 = arith.truncf %15 : vector<16x96xf32> to vector<16x96xbf16>
      %c0_14 = arith.constant 0 : index
      %c0_15 = arith.constant 0 : index
      %17 = vector.load %arg6[%c0_14, %c0_15] : memref<16x96xbf16, #tpu.memory_space<vmem>>, vector<16x96xbf16>
      tpu.vector_store %arg6[%c0_14, %c0_15], %16 {strides = array<i32>} : memref<16x96xbf16, #tpu.memory_space<vmem>>, vector<16x96xbf16>,
    } else {
    }
    return
  }
  func.func @transform_0(%arg0: i32, %arg1: i32, %arg2: i32) -> (i32, i32) {
    %c0_i32 = arith.constant 0 : i32
    return %arg0, %arg2 : i32, i32
  }
  func.func @transform_1(%arg0: i32, %arg1: i32, %arg2: i32) -> (i32, i32) {
    %c0_i32 = arith.constant 0 : i32
    return %arg2, %arg1 : i32, i32
  }
  func.func @transform_2(%arg0: i32, %arg1: i32, %arg2: i32) -> (i32, i32) {
    %c0_i32 = arith.constant 0 : i32
    %c0_i32_0 = arith.constant 0 : i32
    return %c0_i32, %arg1 : i32, i32
  }
  func.func @transform_3(%arg0: i32, %arg1: i32, %arg2: i32) -> (i32, i32) {
    %c0_i32 = arith.constant 0 : i32
    return %arg0, %arg1 : i32, i32
  }
}

</mosaic_0001>

<llo_original>
// kernel: tpu_custom_call.1
$region0: #{tpu_custom_call.1}
  #allocation0 [shape = 'u32[]', space=smem, size = 0x4, offset = 0x4, fixed_abs, tag = 'smem constant byte address 0x4 - core index']
  #allocation1 [shape = 'u32[144,128]{1,0:T(1,128)}', space=vmem, size = 0x12000, scoped, tag = 'internal scratch']
  #allocation2 [shape = 'f32[16,96]{1,0:T(8,128)}', space=vmem, size = 0x2000, scoped, tag = 'scratch operand']
  %s0 = inlined_call_operand.hbm [shape: bf16[16,32], index: 0, kind: input, shape index: {}]
  %s1 = inlined_call_operand.hbm [shape: bf16[32,96], index: 1, kind: input, shape index: {}]
  %s2 = inlined_call_operand.vmem [shape: f32[1,96], index: 2, kind: input, shape index: {}]
  %s3 = inlined_call_operand.hbm [shape: bf16[16,96], index: 3, kind: output, shape index: {}]
  %s4 = sld [smem:[#allocation0]]
  $region38: #{tpu_custom_call.1} parent=0
    _
  %s6 = ssub.s32 1, %s4
  %s7 = scalar_select 0, %s6, %s4
  $region1: #{tpu_custom_call.1} parent=0
    #allocation3 [shape = 'u8[4096]{0}', space=vmem, size = 0x1000, scoped, tag = 'input window, operand 0, single buffered']
    #allocation4 [shape = 's32[1]{0}', space=sflag, size = 0x4, scoped, tag = 'scoped memory for tpu_custom_call.1']
    #allocation5 [shape = 's32[1]{0}', space=sflag, size = 0x4, scoped, tag = 'scoped memory for tpu_custom_call.1']
    #allocation6 [shape = 'u8[8192]{0}', space=vmem, size = 0x2000, scoped, tag = 'input window, operand 1, single buffered']
    #allocation7 [shape = 's32[1]{0}', space=sflag, size = 0x4, scoped, tag = 'scoped memory for tpu_custom_call.1']
    #allocation8 [shape = 'u8[4096]{0}', space=vmem, size = 0x1000, scoped, tag = 'output window, operand 0, single buffered']
    %8 = vsyncpa [#allocation4], 0
    %9 = vsyncpa [#allocation7], 0
    %10 = vsyncpa [#allocation5], 0
    // Predicated region
    $region2: #{tpu_custom_call.1} parent=1 // pred_check
      _
    $region3: #{tpu_custom_call.1} parent=1 // pred_check_branch
      %12 = sbr.rel (0) target = $region5
    $region4: #{tpu_custom_call.1} parent=1 // pred_region
      %s14 = ssub.s32 128, 128
      %15 = vsyncadd [#allocation4], %s14
      %s16 = sshll.u32 [#allocation3], 4
      %s17 = int_to_ptr.vmem [resolvable:$true] %s16
      %22 = dma.hbm_to_vmem [thread:$0]  %s0, 128, %s17, [#allocation4], 64, 64, 4
    $region5: #{tpu_custom_call.1} parent=1 // pred_fallthru
      _
    // Predicated region
    $region6: #{tpu_custom_call.1} parent=1 // pred_check
      _
    $region7: #{tpu_custom_call.1} parent=1 // pred_check_branch
      %24 = sbr.rel (0) target = $region9
    $region8: #{tpu_custom_call.1} parent=1 // pred_region
      %s26 = ssub.s32 256, 256
      %27 = vsyncadd [#allocation7], %s26
      %s28 = sshll.u32 [#allocation6], 4
      %s29 = int_to_ptr.vmem [resolvable:$true] %s28
      %34 = dma.hbm_to_vmem [thread:$0]  %s1, 256, %s29, [#allocation7], 64, 64, 4
    $region9: #{tpu_custom_call.1} parent=1 // pred_fallthru
      _
    // Predicated region
    $region10: #{tpu_custom_call.1} parent=1 // pred_check
      _
    $region11: #{tpu_custom_call.1} parent=1 // pred_check_branch
      %36 = sbr.rel (0) target = $region13
    $region12: #{tpu_custom_call.1} parent=1 // pred_region
      _
    $region13: #{tpu_custom_call.1} parent=1 // pred_fallthru
      _
    // Predicated region
    $region14: #{tpu_custom_call.1} parent=1 // pred_check
      _
    $region15: #{tpu_custom_call.1} parent=1 // pred_check_branch
      %38 = sbr.rel (0) target = $region17
    $region16: #{tpu_custom_call.1} parent=1 // pred_region
      %39 = dma.done [#allocation4], 128
    $region17: #{tpu_custom_call.1} parent=1 // pred_fallthru
      _
    // Predicated region
    $region18: #{tpu_custom_call.1} parent=1 // pred_check
      _
    $region19: #{tpu_custom_call.1} parent=1 // pred_check_branch
      %41 = sbr.rel (0) target = $region21
    $region20: #{tpu_custom_call.1} parent=1 // pred_region
      %42 = dma.done [#allocation7], 256
    $region21: #{tpu_custom_call.1} parent=1 // pred_fallthru
      _
    %p44 = scmp.eq.s32.totalorder 0, 0
    // Predicated region
    $region22: #{tpu_custom_call.1} parent=1 // pred_check
      %p45 = pneg %p44
    $region23: #{tpu_custom_call.1} parent=1 // pred_check_branch
      %47 = sbr.rel (%p45) target = $region25
    $region24: #{tpu_custom_call.1} parent=1 // pred_region
      %vm48 = vcmask 785408
      %49 = vst.msk [vmem:[#allocation2] sm:$0xff] %vm48, 0.0
      %50 = vst.msk [vmem:[#allocation2 + $0x8] sm:$0xff] %vm48, 0.0
    $region25: #{tpu_custom_call.1} parent=1 // pred_fallthru
      _
    %v51 = vld [vmem:[#allocation2] sm:$0xff]
    %v52 = vld [vmem:[#allocation2 + $0x8] sm:$0xff]
    %v53 = vld [vmem:[#allocation3] sm:$0xf]
    %v54 = vld [vmem:[#allocation3 + $0x4] sm:$0xf]
    %v55 = vld [vmem:[#allocation6] sm:$0xf]
    %v56 = vld [vmem:[#allocation6 + $0x4] sm:$0xf]
    %v57 = vld [vmem:[#allocation6 + $0x8] sm:$0xf]
    %v58 = vld [vmem:[#allocation6 + $0xc] sm:$0xf]
    %v61 = vunpack.c.l.b16 %v53
    %v62 = vunpack.c.l.b16 %v54
    %v63 = vpack.c.b16 %v62, %v61
    %v68 = vunpack.c.l.b16 %v55
    %v69 = vunpack.c.l.b16 %v56
    %v70 = vunpack.c.l.b16 %v57
    %v71 = vunpack.c.l.b16 %v58
    %v72 = vpack.c.b16 %v69, %v68
    %v73 = vpack.c.b16 %v71, %v70
    %vm76 = vcmask 261120
    %v78 = vsel %vm76, %v63, 0
    %80 = vmatprep.subr.bf16.mxu0 0
    %81 = vmatpush1.bf16.msra.mxu0 %v72
    %82 = vmatprep.subr.bf16.mxu0 0
    %83 = vmatpush1.bf16.msra.mxu0 %v73
    %84 = vmatprep.subr.bf16.mxu0 0
    %85 = vmatpush1.bf16.msra.mxu0 0
    %86 = vmatprep.subr.bf16.mxu0 0
    %87 = vmatpush1.bf16.msra.mxu0 0
    %88 = vmatprep.subr.bf16.mxu0 0
    %89 = vmatpush1.bf16.msra.mxu0 0
    %90 = vmatprep.subr.bf16.mxu0 0
    %91 = vmatpush1.bf16.msra.mxu0 0
    %92 = vmatprep.subr.bf16.mxu0 0
    %93 = vmatpush1.bf16.msra.mxu0 0
    %94 = vmatprep.subr.bf16.mxu0 0
    %95 = vmatpush1.bf16.msra.mxu0 0
    %96 = vmatprep.subr.bf16.mxu0 0
    %97 = vmatpush1.bf16.msra.mxu0 0
    %98 = vmatprep.subr.bf16.mxu0 0
    %99 = vmatpush1.bf16.msra.mxu0 0
    %100 = vmatprep.subr.bf16.mxu0 0
    %101 = vmatpush1.bf16.msra.mxu0 0
    %102 = vmatprep.subr.bf16.mxu0 0
    %103 = vmatpush1.bf16.msra.mxu0 0
    %104 = vmatprep.subr.bf16.mxu0 0
    %105 = vmatpush1.bf16.msra.mxu0 0
    %106 = vmatprep.subr.bf16.mxu0 0
    %107 = vmatpush1.bf16.msra.mxu0 0
    %108 = vmatprep.subr.bf16.mxu0 0
    %109 = vmatpush1.bf16.msra.mxu0 0
    %110 = vmatprep.subr.bf16.mxu0 0
    %111 = vmatpush1.bf16.msra.mxu0 0
    %112 = vmatprep.mubr.bf16.mxu0 0
    %113 = vmatmul.mubr.bf16.gmra.mrb[0].mxu0 %v78
    %v114 = vpop.f32.mrb[0].mxu0
    %v115 = vadd.f32 0.0, %v114
    %v116 = vpop.f32.mrb[0].mxu0
    %v117 = vpop.f32.mrb[0].mxu0
    %v118 = vadd.f32 0.0, %v117
    %v119 = vpop.f32.mrb[0].mxu0
    %120 = vdwg.mxu0
    %v121 = vadd.f32 %v51, %v115
    %v122 = vadd.f32 %v52, %v118
    %vm123 = vcmask 785408
    %124 = vst.msk [vmem:[#allocation2] sm:$0xff] %vm123, %v121
    %125 = vst.msk [vmem:[#allocation2 + $0x8] sm:$0xff] %vm123, %v122
    // Predicated region
    $region26: #{tpu_custom_call.1} parent=1 // pred_check
      %p126 = pneg %p44
    $region27: #{tpu_custom_call.1} parent=1 // pred_check_branch
      %128 = sbr.rel (%p126) target = $region29
    $region28: #{tpu_custom_call.1} parent=1 // pred_region
      %v129 = vld [vmem:[#allocation2] sm:$0xff]
      %v130 = vld [vmem:[#allocation2 + $0x8] sm:$0xff]
      %v131 = vld [vmem:[%s2] sm:$0x1]
      %v133 = vlaneseq
      %v134 = vshrl.u32 %v133, 7
      %v135 = vsub.s32 0, %v134
      %v136 = vrot.slane %v131, %v135
      %v138 = vadd.f32 %v129, %v136
      %v139 = vadd.f32 %v130, %v136
      %v140 = vpack.c.bf16 %v139, %v138
      %v142 = vunpack.c.l.b16 %v140
      %v143 = vunpack.c.h.b16 %v140
      %v144 = vpack.c.b16 %v142, %v142
      %v145 = vpack.c.b16 %v143, %v143
      %vm148 = vcmask 781312
      %149 = vst.msk [vmem:[#allocation8] sm:$0xf] %vm148, %v144
      %150 = vst.msk [vmem:[#allocation8 + $0x4] sm:$0xf] %vm148, %v145
    $region29: #{tpu_custom_call.1} parent=1 // pred_fallthru
      _
    // Predicated region
    $region30: #{tpu_custom_call.1} parent=1 // pred_check
      _
    $region31: #{tpu_custom_call.1} parent=1 // pred_check_branch
      %152 = sbr.rel (0) target = $region33
    $region32: #{tpu_custom_call.1} parent=1 // pred_region
      %s154 = ssub.s32 128, 128
      %155 = vsyncadd [#allocation5], %s154
      %s156 = sshll.u32 [#allocation8], 4
      %s157 = int_to_ptr.vmem [resolvable:$true] %s156
      %162 = dma.vmem_to_hbm [thread:$0]  %s157, 128, %s3, [#allocation5], 64, 64, 4
    $region33: #{tpu_custom_call.1} parent=1 // pred_fallthru
      _
    // Predicated region
    $region34: #{tpu_custom_call.1} parent=1 // pred_check
      _
    $region35: #{tpu_custom_call.1} parent=1 // pred_check_branch
      %164 = sbr.rel (0) target = $region37
    $region36: #{tpu_custom_call.1} parent=1 // pred_region
      %165 = dma.done [#allocation5], 128
    $region37: #{tpu_custom_call.1} parent=1 // pred_fallthru
      _
    %166 = vsyncpa [#allocation4], 1
    %167 = vsyncpa [#allocation7], 1
    %168 = vsyncpa [#allocation5], 1

</llo_original>
